<compile_context>
chip_gen: v7x
topology: tpu7x:2x2x1
jax: 0.10.0
libtpu: 0.0.40
codegen_flags: <defaults>
</compile_context>

<pallas_src>
import functools

import jax
import jax.numpy as jnp
from jax.experimental import pallas as pl
from jax.experimental.pallas import tpu as pltpu

EPS = 1e-5
SLOPE = 0.01


# --------------------------------------------------------------------------
# Hardware-aware sizing
# --------------------------------------------------------------------------
def _sublane_pack(itemsize: int) -> int:
    # Sublane packing width: f32 -> 8, bf16 -> 16, int8/fp8 -> 32.
    return 8 * max(4 // itemsize, 1)


def _tpu_budgets():
    """Generation-aware (vmem_limit_bytes, pass1_block_budget, pass2_block_budget)."""
    try:
        cap = getattr(pltpu.get_tpu_info(), "vmem_capacity_bytes", None)
    except Exception:
        cap = None
    if cap is None:
        cap = 64 * 1024 * 1024  # conservative (v7x-sized VMEM)
    if cap >= 100 * 1024 * 1024:          # v5e / v6e: 128 MiB physical VMEM
        vmem_limit = 64 * 1024 * 1024
        p2_budget = 12 * 1024 * 1024
    else:                                  # v7x: 64 MiB physical VMEM per TC
        vmem_limit = 44 * 1024 * 1024
        p2_budget = 8 * 1024 * 1024
    # pass 1 only pipelines the input (~2x tile resident); pass 2 pipelines
    # input + output (~4x tile resident) -> pass-1 tiles can be ~2x larger.
    return vmem_limit, 2 * p2_budget, p2_budget


def _pick_spatial_tile(hw, c, itemsize, budget_bytes):
    """Lane-aligned spatial tile T for (C, T) blocks.

    Returns (t, num_tiles, needs_mask). Uses a cdiv grid + mask when hw is not
    a multiple of T, instead of one giant full-extent block."""
    if hw <= 128:
        return hw, 1, False                               # full-extent block
    pack = _sublane_pack(itemsize)
    c_pad = -(-c // pack) * pack                          # sublane padding of C
    t = ((budget_bytes // (c_pad * itemsize)) // 128) * 128
    t = max(t, 128)
    t = min(t, -(-hw // 128) * 128)                       # never exceed padded hw
    num = -(-hw // t)
    return t, num, (hw % t) != 0


def _pick_row_tile(rows, c, itemsize, budget_bytes):
    """Sublane tile S for (C, S, 128) blocks (small-C layout)."""
    s = ((budget_bytes // (c * 128 * itemsize)) // 8) * 8
    s = max(s, 8)
    s = min(s, -(-rows // 8) * 8)
    num = -(-rows // s)
    return s, num, (rows % s) != 0


def _fused_path_fits(n, c, hw, itemsize, vmem_limit):
    """Can the whole activation live in VMEM for the single-pass fused kernel?"""
    pack = _sublane_pack(itemsize)
    c_pad_in = -(-c // pack) * pack
    c_pad_f32 = -(-c // 8) * 8
    hw_pad = -(-hw // 128) * 128
    in_bytes = n * c_pad_in * hw_pad * itemsize
    f32_bytes = n * c_pad_f32 * hw_pad * 4
    # input block + output block + ~2 f32 temporaries of the activation
    need = 2 * in_bytes + 2 * f32_bytes
    return need <= (vmem_limit * 3) // 4


# --------------------------------------------------------------------------
# Kernels
# --------------------------------------------------------------------------
def _fused_kernel(x_ref, gamma_ref, beta_ref, o_ref, *, count, eps, slope):
    # Whole activation resident in VMEM: stats + normalize + LeakyReLU in one go.
    x = x_ref[...].astype(jnp.float32)                        # (n, c, hw)
    sum_x = jnp.sum(jnp.sum(x, axis=2, keepdims=True), axis=0, keepdims=True)
    sum_sq = jnp.sum(jnp.sum(x * x, axis=2, keepdims=True), axis=0, keepdims=True)
    mean = sum_x / count                                      # (1, c, 1)
    var = jnp.maximum(sum_sq / count - mean * mean, 0.0)
    inv_std = jax.lax.rsqrt(var + eps)                        # EUP slot
    scale = inv_std * gamma_ref[...][None, :, :]
    shift = beta_ref[...][None, :, :] - mean * scale
    y = x * scale + shift
    o_ref[...] = jnp.maximum(y, slope * y).astype(o_ref.dtype)


def _stats_kernel_2d(x_ref, sum_ref, sq_ref, *, hw, t, needs_mask):
    # x_ref: (C, T) tile (batch dim squeezed); sum/sq: (C, 1) f32 per-batch
    # accumulators, resident across the spatial axis (index_map depends on i only).
    j = pl.program_id(1)

    @pl.when(j == 0)
    def _init():
        sum_ref[...] = jnp.zeros_like(sum_ref)
        sq_ref[...] = jnp.zeros_like(sq_ref)

    x = x_ref[...].astype(jnp.float32)                        # (C, T)
    if needs_mask:
        lane = jax.lax.broadcasted_iota(jnp.int32, x.shape, 1)
        x = jnp.where(lane < (hw - j * t), x, 0.0)            # zero OOB lanes
    sum_ref[...] += jnp.sum(x, axis=1, keepdims=True)          # lane reduce (XLU)
    sq_ref[...] += jnp.sum(x * x, axis=1, keepdims=True)


def _norm_kernel_2d(x_ref, scale_ref, shift_ref, o_ref, *, slope):
    # x_ref/o_ref: (C, T) tile; scale/shift: (C, 1) f32, lane-broadcast.
    x = x_ref[...].astype(jnp.float32)
    y = x * scale_ref[...] + shift_ref[...]                    # fused BN affine
    o_ref[...] = jnp.maximum(y, slope * y).astype(o_ref.dtype)  # 1 VPU op LeakyReLU


def _stats_kernel_4d(x_ref, sum_ref, sq_ref, *, rows, s, needs_mask):
    # Small-C layout: x_ref (C, S, 128); every vreg full regardless of C.
    j = pl.program_id(1)

    @pl.when(j == 0)
    def _init():
        sum_ref[...] = jnp.zeros_like(sum_ref)
        sq_ref[...] = jnp.zeros_like(sq_ref)

    x = x_ref[...].astype(jnp.float32)                         # (C, S, 128)
    if needs_mask:
        row = jax.lax.broadcasted_iota(jnp.int32, x.shape, 1)
        x = jnp.where(row < (rows - j * s), x, 0.0)            # zero OOB sublanes
    xs = jnp.sum(x, axis=2)                                    # (C, S) lane reduce
    sum_ref[...] += jnp.sum(xs, axis=1, keepdims=True)
    x2 = jnp.sum(x * x, axis=2)
    sq_ref[...] += jnp.sum(x2, axis=1, keepdims=True)


def _norm_kernel_4d(x_ref, scale_ref, shift_ref, o_ref, *, slope):
    x = x_ref[...].astype(jnp.float32)                         # (C, S, 128)
    scale = scale_ref[...][:, :, None]                         # (C, 1, 1)
    shift = shift_ref[...][:, :, None]
    y = x * scale + shift
    o_ref[...] = jnp.maximum(y, slope * y).astype(o_ref.dtype)


# --------------------------------------------------------------------------
# Wrapper
# --------------------------------------------------------------------------
def myabn_forward(x_nchw, gamma, beta, *, eps=EPS, slope=SLOPE, single_pass=None):
    """x_nchw: (N, C, H, W); gamma, beta: (C,). Returns (N, C, H, W)."""
    n, c, h, w = x_nchw.shape
    hw = h * w
    itemsize = jnp.dtype(x_nchw.dtype).itemsize
    vmem_limit, p1_budget, p2_budget = _tpu_budgets()
    pack = _sublane_pack(itemsize)

    gamma_f = gamma.astype(jnp.float32).reshape(c, 1)
    beta_f = beta.astype(jnp.float32).reshape(c, 1)

    # ---- fast path: whole activation VMEM-resident, single fused kernel ----
    if single_pass is None:
        single_pass = _fused_path_fits(n, c, hw, itemsize, vmem_limit)
    if single_pass:
        x_in = x_nchw.reshape(n, c, hw)
        out = pl.pallas_call(
            functools.partial(_fused_kernel, count=float(n * hw), eps=eps, slope=slope),
            out_shape=jax.ShapeDtypeStruct((n, c, hw), x_nchw.dtype),
            grid=(1,),
            in_specs=[pl.BlockSpec((n, c, hw), lambda i: (0, 0, 0)),
                      pl.BlockSpec((c, 1), lambda i: (0, 0)),
                      pl.BlockSpec((c, 1), lambda i: (0, 0))],
            out_specs=pl.BlockSpec((n, c, hw), lambda i: (0, 0, 0)),
            compiler_params=pltpu.CompilerParams(vmem_limit_bytes=vmem_limit),
        )(x_in, gamma_f, beta_f)
        return out.reshape(n, c, h, w)

    # ---- choose layout for the two-pass path ----
    use_4d = (c < pack) and (hw % 128 == 0) and (hw // 128 >= 8)

    if use_4d:
        rows = hw // 128
        x_in = x_nchw.reshape(n, c, rows, 128)
        s1, n1, m1 = _pick_row_tile(rows, c, itemsize, p1_budget)
        s2, n2, _ = _pick_row_tile(rows, c, itemsize, p2_budget)
        stats_kernel = functools.partial(_stats_kernel_4d, rows=rows, s=s1, needs_mask=m1)
        norm_kernel = functools.partial(_norm_kernel_4d, slope=slope)
        x_spec_1 = pl.BlockSpec((None, c, s1, 128), lambda i, j: (i, 0, j, 0))
        x_spec_2 = pl.BlockSpec((None, c, s2, 128), lambda i, j: (i, 0, j, 0))
    else:
        x_in = x_nchw.reshape(n, c, hw)
        t1, n1, m1 = _pick_spatial_tile(hw, c, itemsize, p1_budget)
        t2, n2, _ = _pick_spatial_tile(hw, c, itemsize, p2_budget)
        stats_kernel = functools.partial(_stats_kernel_2d, hw=hw, t=t1, needs_mask=m1)
        norm_kernel = functools.partial(_norm_kernel_2d, slope=slope)
        x_spec_1 = pl.BlockSpec((None, c, t1), lambda i, j: (i, 0, j))
        x_spec_2 = pl.BlockSpec((None, c, t2), lambda i, j: (i, 0, j))

    # ---- pass 1: per-(batch, channel) partial sums; batch axis parallel ----
    sum_nx, sq_nx = pl.pallas_call(
        stats_kernel,
        out_shape=(jax.ShapeDtypeStruct((n, c, 1), jnp.float32),
                   jax.ShapeDtypeStruct((n, c, 1), jnp.float32)),
        grid=(n, n1),
        in_specs=[x_spec_1],
        out_specs=(pl.BlockSpec((None, c, 1), lambda i, j: (i, 0, 0)),
                   pl.BlockSpec((None, c, 1), lambda i, j: (i, 0, 0))),
        compiler_params=pltpu.CompilerParams(
            dimension_semantics=("parallel", "arbitrary"),
            vmem_limit_bytes=vmem_limit),
    )(x_in)

    # ---- tiny per-channel epilogue (C-sized, plain JAX) ----
    count = jnp.float32(n * hw)
    sum_x = jnp.sum(sum_nx, axis=0)                            # (C, 1)
    sum_sq = jnp.sum(sq_nx, axis=0)
    mean = sum_x / count
    var = jnp.maximum(sum_sq / count - mean * mean, 0.0)       # biased var (BN)
    inv_std = jax.lax.rsqrt(var + eps)
    scale = inv_std * gamma_f
    shift = beta_f - mean * scale

    # ---- pass 2: normalize + LeakyReLU, fully parallel tiles ----
    out = pl.pallas_call(
        norm_kernel,
        out_shape=jax.ShapeDtypeStruct(x_in.shape, x_nchw.dtype),
        grid=(n, n2),
        in_specs=[x_spec_2,
                  pl.BlockSpec((c, 1), lambda i, j: (0, 0)),
                  pl.BlockSpec((c, 1), lambda i, j: (0, 0))],
        out_specs=x_spec_2,
        compiler_params=pltpu.CompilerParams(
            dimension_semantics=("parallel", "parallel"),
            vmem_limit_bytes=vmem_limit),
    )(x_in, scale, shift)

    return out.reshape(n, c, h, w)


# --------------------------------------------------------------------------
# Reference & test
# --------------------------------------------------------------------------
def _reference(x_nchw, gamma, beta, *, eps=EPS, slope=SLOPE):
    # Pure-JAX reference: training-mode BatchNorm2d + LeakyReLU(slope).
    x = x_nchw.astype(jnp.float32)
    mean = jnp.mean(x, axis=(0, 2, 3), keepdims=True)
    var = jnp.mean(jnp.square(x - mean), axis=(0, 2, 3), keepdims=True)
    y = (x - mean) * jax.lax.rsqrt(var + eps)
    y = y * gamma.reshape(1, -1, 1, 1) + beta.reshape(1, -1, 1, 1)
    return jnp.where(y >= 0, y, slope * y).astype(x_nchw.dtype)


if __name__ == "__main__":
    key = jax.random.PRNGKey(0)

    def _check(shape, key, **kwargs):
        n, c, h, w = shape
        kx, key = jax.random.split(key)
        x = jax.random.normal(kx, shape, dtype=jnp.float32)
        # Non-trivial BN affine parameters so the affine path is exercised.
        gamma = 1.0 + 0.1 * jnp.arange(c, dtype=jnp.float32)
        beta = 0.01 * jnp.arange(c, dtype=jnp.float32)
        out = jax.block_until_ready(myabn_forward(x, gamma, beta, **kwargs))
        ref = _reference(x, gamma, beta)
        assert out.shape == shape
        err = float(jnp.max(jnp.abs(out - ref)))
        assert err < 2e-4, (shape, kwargs, err)
        return key

    # 1) fused single-pass VMEM-resident fast path (auto-selected for small x)
    key = _check((2, 4, 16, 16), key)
    # 2) two-pass, channels-on-sublanes layout
    key = _check((2, 4, 16, 16), key, single_pass=False)
    # 3) two-pass, small-C 4-D layout (hw % 128 == 0, hw//128 >= 8, C < pack)
    key = _check((2, 4, 32, 32), key, single_pass=False)
    # 4) two-pass, lane-masked stats pass (hw not a multiple of 128)
    key = _check((2, 4, 12, 12), key, single_pass=False)

    print("KERNEL_OK")
</pallas_src>

<mosaic_0001>
module attributes {stable_mosaic.version = 11 : i64} {
  func.func @_fused_kernel(%arg0: i32, %arg1: memref<2x4x256xf32, #tpu.memory_space<vmem>>, %arg2: memref<4x1xf32, #tpu.memory_space<vmem>>, %arg3: memref<4x1xf32, #tpu.memory_space<vmem>>, %arg4: memref<2x4x256xf32, #tpu.memory_space<vmem>>) attributes {dimension_semantics = [#tpu.dimension_semantics<arbitrary>], iteration_bounds = array<i64: 1>, scalar_prefetch = 0 : i64, scratch_operands = 0 : i64, tpu.core_type = #tpu.core_type<tc>, window_params = [{pipeline_mode = #tpu.pipeline_mode<synchronous>, transform_indices = @transform_0, window_bounds = array<i64: 2, 4, 256>}, {pipeline_mode = #tpu.pipeline_mode<synchronous>, transform_indices = @transform_1, window_bounds = array<i64: 4, 1>}, {pipeline_mode = #tpu.pipeline_mode<synchronous>, transform_indices = @transform_2, window_bounds = array<i64: 4, 1>}, {pipeline_mode = #tpu.pipeline_mode<synchronous>, transform_indices = @transform_3, window_bounds = array<i64: 2, 4, 256>}]} {
    %c0 = arith.constant 0 : index
    %c0_0 = arith.constant 0 : index
    %c0_1 = arith.constant 0 : index
    %0 = vector.load %arg1[%c0, %c0_0, %c0_1] : memref<2x4x256xf32, #tpu.memory_space<vmem>>, vector<2x4x256xf32>
    %cst = arith.constant dense<0.000000e+00> : vector<2x4xf32>
    %1 = vector.multi_reduction <add>, %0, %cst [2] : vector<2x4x256xf32> to vector<2x4xf32>
    %2 = vector.shape_cast %1 : vector<2x4xf32> to vector<2x4x1xf32>
    %cst_2 = arith.constant dense<0.000000e+00> : vector<4x1xf32>
    %3 = vector.multi_reduction <add>, %2, %cst_2 [0] : vector<2x4x1xf32> to vector<4x1xf32>
    %4 = vector.shape_cast %3 : vector<4x1xf32> to vector<1x4x1xf32>
    %5 = arith.mulf %0, %0 : vector<2x4x256xf32>
    %cst_3 = arith.constant dense<0.000000e+00> : vector<2x4xf32>
    %6 = vector.multi_reduction <add>, %5, %cst_3 [2] : vector<2x4x256xf32> to vector<2x4xf32>
    %7 = vector.shape_cast %6 : vector<2x4xf32> to vector<2x4x1xf32>
    %cst_4 = arith.constant dense<0.000000e+00> : vector<4x1xf32>
    %8 = vector.multi_reduction <add>, %7, %cst_4 [0] : vector<2x4x1xf32> to vector<4x1xf32>
    %9 = vector.shape_cast %8 : vector<4x1xf32> to vector<1x4x1xf32>
    %cst_5 = arith.constant 5.120000e+02 : f32
    %10 = vector.broadcast %cst_5 : f32 to vector<1x4x1xf32>
    %11 = arith.divf %4, %10 : vector<1x4x1xf32>
    %cst_6 = arith.constant 5.120000e+02 : f32
    %12 = vector.broadcast %cst_6 : f32 to vector<1x4x1xf32>
    %13 = arith.divf %9, %12 : vector<1x4x1xf32>
    %14 = arith.mulf %11, %11 : vector<1x4x1xf32>
    %15 = arith.subf %13, %14 : vector<1x4x1xf32>
    %cst_7 = arith.constant 0.000000e+00 : f32
    %16 = vector.broadcast %cst_7 : f32 to vector<1x4x1xf32>
    %17 = arith.maximumf %15, %16 : vector<1x4x1xf32>
    %cst_8 = arith.constant 9.99999974E-6 : f32
    %18 = vector.broadcast %cst_8 : f32 to vector<1x4x1xf32>
    %19 = arith.addf %17, %18 : vector<1x4x1xf32>
    %20 = math.rsqrt %19 : vector<1x4x1xf32>
    %c0_9 = arith.constant 0 : index
    %c0_10 = arith.constant 0 : index
    %21 = vector.load %arg2[%c0_9, %c0_10] : memref<4x1xf32, #tpu.memory_space<vmem>>, vector<4x1xf32>
    %22 = vector.shape_cast %21 : vector<4x1xf32> to vector<1x4x1xf32>
    %23 = arith.mulf %20, %22 : vector<1x4x1xf32>
    %c0_11 = arith.constant 0 : index
    %c0_12 = arith.constant 0 : index
    %24 = vector.load %arg3[%c0_11, %c0_12] : memref<4x1xf32, #tpu.memory_space<vmem>>, vector<4x1xf32>
    %25 = vector.shape_cast %24 : vector<4x1xf32> to vector<1x4x1xf32>
    %26 = arith.mulf %11, %23 : vector<1x4x1xf32>
    %27 = arith.subf %25, %26 : vector<1x4x1xf32>
    %28 = vector.broadcast %23 : vector<1x4x1xf32> to vector<2x4x256xf32>
    %29 = arith.mulf %0, %28 : vector<2x4x256xf32>
    %30 = vector.broadcast %27 : vector<1x4x1xf32> to vector<2x4x256xf32>
    %31 = arith.addf %29, %30 : vector<2x4x256xf32>
    %cst_13 = arith.constant 0.00999999977 : f32
    %32 = vector.broadcast %cst_13 : f32 to vector<2x4x256xf32>
    %33 = arith.mulf %32, %31 : vector<2x4x256xf32>
    %34 = arith.maximumf %31, %33 : vector<2x4x256xf32>
    %c0_14 = arith.constant 0 : index
    %c0_15 = arith.constant 0 : index
    %c0_16 = arith.constant 0 : index
    %35 = vector.load %arg4[%c0_14, %c0_15, %c0_16] : memref<2x4x256xf32, #tpu.memory_space<vmem>>, vector<2x4x256xf32>
    tpu.vector_store %arg4[%c0_14, %c0_15, %c0_16], %34 {strides = array<i32>} : memref<2x4x256xf32, #tpu.memory_space<vmem>>, vector<2x4x256xf32>,
    return
  }
  func.func @transform_0(%arg0: i32) -> (i32, i32, i32) {
    %c0_i32 = arith.constant 0 : i32
    %c0_i32_0 = arith.constant 0 : i32
    %c0_i32_1 = arith.constant 0 : i32
    %c0_i32_2 = arith.constant 0 : i32
    return %c0_i32, %c0_i32_0, %c0_i32_1 : i32, i32, i32
  }
  func.func @transform_1(%arg0: i32) -> (i32, i32) {
    %c0_i32 = arith.constant 0 : i32
    %c0_i32_0 = arith.constant 0 : i32
    %c0_i32_1 = arith.constant 0 : i32
    return %c0_i32, %c0_i32_0 : i32, i32
  }
  func.func @transform_2(%arg0: i32) -> (i32, i32) {
    %c0_i32 = arith.constant 0 : i32
    %c0_i32_0 = arith.constant 0 : i32
    %c0_i32_1 = arith.constant 0 : i32
    return %c0_i32, %c0_i32_0 : i32, i32
  }
  func.func @transform_3(%arg0: i32) -> (i32, i32, i32) {
    %c0_i32 = arith.constant 0 : i32
    %c0_i32_0 = arith.constant 0 : i32
    %c0_i32_1 = arith.constant 0 : i32
    %c0_i32_2 = arith.constant 0 : i32
    return %c0_i32, %c0_i32_0, %c0_i32_1 : i32, i32, i32
  }
}

</mosaic_0001>

<llo_original>
// kernel: tpu_custom_call.1
$region0: #{tpu_custom_call.1}
  #allocation0 [shape = 'u32[]', space=smem, size = 0x4, offset = 0x4, fixed_abs, tag = 'smem constant byte address 0x4 - core index']
  #allocation1 [shape = 'u32[144,128]{1,0:T(1,128)}', space=vmem, size = 0x12000, scoped, tag = 'internal scratch']
  %s0 = inlined_call_operand.hbm [shape: f32[2,4,256], index: 0, kind: input, shape index: {}]
  %s1 = inlined_call_operand.vmem [shape: f32[4,1], index: 1, kind: input, shape index: {}]
  %s2 = inlined_call_operand.vmem [shape: f32[4,1], index: 2, kind: input, shape index: {}]
  %s3 = inlined_call_operand.hbm [shape: f32[2,4,256], index: 3, kind: output, shape index: {}]
  %s4 = sld [smem:[#allocation0]]
  $region26: #{tpu_custom_call.1} parent=0
    _
  %s6 = ssub.s32 1, %s4
  %s7 = scalar_select 0, %s6, %s4
  $region1: #{tpu_custom_call.1} parent=0
    #allocation2 [shape = 'u8[8192]{0}', space=vmem, size = 0x2000, scoped, tag = 'input window, operand 0, single buffered']
    #allocation3 [shape = 's32[1]{0}', space=sflag, size = 0x4, scoped, tag = 'scoped memory for tpu_custom_call.1']
    #allocation4 [shape = 's32[1]{0}', space=sflag, size = 0x4, scoped, tag = 'scoped memory for tpu_custom_call.1']
    #allocation5 [shape = 'u8[8192]{0}', space=vmem, size = 0x2000, scoped, tag = 'output window, operand 0, single buffered']
    %8 = vsyncpa [#allocation3], 0
    %9 = vsyncpa [#allocation4], 0
    // Predicated region
    $region2: #{tpu_custom_call.1} parent=1 // pred_check
      _
    $region3: #{tpu_custom_call.1} parent=1 // pred_check_branch
      %11 = sbr.rel (0) target = $region5
    $region4: #{tpu_custom_call.1} parent=1 // pred_region
      %s13 = ssub.s32 256, 256
      %14 = vsyncadd [#allocation3], %s13
      %s15 = sshll.u32 [#allocation2], 4
      %s16 = int_to_ptr.vmem [resolvable:$true] %s15
      %21 = dma.hbm_to_vmem [thread:$0]  %s0, 256, %s16, [#allocation3], 128, 128, 8
    $region5: #{tpu_custom_call.1} parent=1 // pred_fallthru
      _
    // Predicated region
    $region6: #{tpu_custom_call.1} parent=1 // pred_check
      _
    $region7: #{tpu_custom_call.1} parent=1 // pred_check_branch
      %23 = sbr.rel (0) target = $region9
    $region8: #{tpu_custom_call.1} parent=1 // pred_region
      _
    $region9: #{tpu_custom_call.1} parent=1 // pred_fallthru
      _
    // Predicated region
    $region10: #{tpu_custom_call.1} parent=1 // pred_check
      _
    $region11: #{tpu_custom_call.1} parent=1 // pred_check_branch
      %25 = sbr.rel (0) target = $region13
    $region12: #{tpu_custom_call.1} parent=1 // pred_region
      _
    $region13: #{tpu_custom_call.1} parent=1 // pred_fallthru
      _
    // Predicated region
    $region14: #{tpu_custom_call.1} parent=1 // pred_check
      _
    $region15: #{tpu_custom_call.1} parent=1 // pred_check_branch
      %27 = sbr.rel (0) target = $region17
    $region16: #{tpu_custom_call.1} parent=1 // pred_region
      %28 = dma.done [#allocation3], 256
    $region17: #{tpu_custom_call.1} parent=1 // pred_fallthru
      _
    %v29 = vld [vmem:[#allocation2] sm:$0xff]
    %v30 = vld [vmem:[#allocation2 + $0x8] sm:$0xff]
    %v33 = vcombine.high %v29, %v29
    %v34 = vcombine.high %v30, %v30
    %vm37 = vcmask 1043456
    %v38 = vsel %vm37, %v29, 0.0
    %v39 = vsel %vm37, %v33, 0.0
    %v40 = vadd.f32 %v38, %v39
    %41 = vadd.xlane.f32.xlu0 %v40
    %v42 = vpop.xlane.xlu0 %41
    %v43 = vsel %vm37, %v30, 0.0
    %v44 = vsel %vm37, %v34, 0.0
    %v45 = vadd.f32 %v43, %v44
    %46 = vadd.xlane.f32.xlu0 %v45
    %v47 = vpop.xlane.xlu0 %46
    %v48 = vsel %vm37, %v42, 0.0
    %v49 = vsel %vm37, %v47, 0.0
    %v50 = vadd.f32 %v48, %v49
    %v51 = vmul.f32 %v29, %v29
    %v52 = vmul.f32 %v30, %v30
    %v55 = vcombine.high %v51, %v51
    %v56 = vcombine.high %v52, %v52
    %v59 = vsel %vm37, %v51, 0.0
    %v60 = vsel %vm37, %v55, 0.0
    %v61 = vadd.f32 %v59, %v60
    %62 = vadd.xlane.f32.xlu0 %v61
    %v63 = vpop.xlane.xlu0 %62
    %v64 = vsel %vm37, %v52, 0.0
    %v65 = vsel %vm37, %v56, 0.0
    %v66 = vadd.f32 %v64, %v65
    %67 = vadd.xlane.f32.xlu0 %v66
    %v68 = vpop.xlane.xlu0 %67
    %v69 = vsel %vm37, %v63, 0.0
    %v70 = vsel %vm37, %v68, 0.0
    %v71 = vadd.f32 %v69, %v70
    %v72 = vrcp.pop 512.0
    %v73 = vmul.f32 %v50, %v72
    %v74 = vmul.f32 %v71, %v72
    %v75 = vmul.f32 %v73, %v73
    %v76 = vsub.f32 %v74, %v75
    %v77 = vmax.f32 %v76, 0.0
    %v78 = vadd.f32 %v77, 1e-05
    %v79 = vrsqrt.pop %v78
    %v80 = vld [vmem:[%s1] sm:$0xf]
    %v81 = vmul.f32 %v79, %v80
    %v82 = vld [vmem:[%s2] sm:$0xf]
    %v83 = vmul.f32 %v73, %v81
    %v84 = vsub.f32 %v82, %v83
    %86 = vset.pattern.permute.xlu0 0
    %87 = vperm.xlu0 %86, %v81
    %v88 = vpop.permute.xlu0 %87
    %v90 = vunpack.c.l.s4 839922192
    %v91 = vunpack.c.0.s8 %v90
    %v92 = vlaneseq
    %v93 = vshrl.u32 %v92, 7
    %v94 = vsub.s32 %v91, %v93
    %v95 = vrot.slane %v88, %v94
    %v97 = vmul.f32 %v29, %v95
    %v98 = vmul.f32 %v30, %v95
    %100 = vset.pattern.permute.xlu0 0
    %101 = vperm.xlu0 %100, %v84
    %v102 = vpop.permute.xlu0 %101
    %v104 = vunpack.c.l.s4 839922192
    %v105 = vunpack.c.0.s8 %v104
    %v106 = vlaneseq
    %v107 = vshrl.u32 %v106, 7
    %v108 = vsub.s32 %v105, %v107
    %v109 = vrot.slane %v102, %v108
    %v111 = vadd.f32 %v97, %v109
    %v112 = vadd.f32 %v98, %v109
    %v113 = vmul.f32 %v111, 0.01
    %v114 = vmul.f32 %v112, 0.01
    %v115 = vmax.f32 %v111, %v113
    %v116 = vmax.f32 %v112, %v114
    %117 = vst [vmem:[#allocation5] sm:$0xff] %v115
    %118 = vst [vmem:[#allocation5 + $0x8] sm:$0xff] %v116
    // Predicated region
    $region18: #{tpu_custom_call.1} parent=1 // pred_check
      _
    $region19: #{tpu_custom_call.1} parent=1 // pred_check_branch
      %120 = sbr.rel (0) target = $region21
    $region20: #{tpu_custom_call.1} parent=1 // pred_region
      %s122 = ssub.s32 256, 256
      %123 = vsyncadd [#allocation4], %s122
      %s124 = sshll.u32 [#allocation5], 4
      %s125 = int_to_ptr.vmem [resolvable:$true] %s124
      %130 = dma.vmem_to_hbm [thread:$0]  %s125, 256, %s3, [#allocation4], 128, 128, 8
    $region21: #{tpu_custom_call.1} parent=1 // pred_fallthru
      _
    // Predicated region
    $region22: #{tpu_custom_call.1} parent=1 // pred_check
      _
    $region23: #{tpu_custom_call.1} parent=1 // pred_check_branch
      %132 = sbr.rel (0) target = $region25
    $region24: #{tpu_custom_call.1} parent=1 // pred_region
      %133 = dma.done [#allocation4], 256
    $region25: #{tpu_custom_call.1} parent=1 // pred_fallthru
      _
    %134 = vsyncpa [#allocation3], 1
    %135 = vsyncpa [#allocation4], 1

</llo_original>
